<compile_context>
chip_gen: v6e
topology: v6e:2x2x1
jax: 0.10.0
libtpu: 0.0.40
codegen_flags: <defaults>
</compile_context>

<pallas_src>
import functools

import jax
import jax.numpy as jnp
from jax.experimental import pallas as pl
from jax.experimental.pallas import tpu as pltpu

# ---- hyperparameters (hp.nz_mid_lstm, hp.n_lstm_layers, etc.) ----
B, T = 4, 6              # batch, rollout length
IN_DIM = 16              # in_dim
OUT_DIM = 8              # out_dim
HIDDEN = 32              # hp.nz_mid_lstm
N_LAYERS = 2             # hp.n_lstm_layers
STATE = 2 * HIDDEN * N_LAYERS   # get_state_size() = 128
OUT_PAD = 128            # output lanes padded to a full lane tile
AUX_W = N_LAYERS * 4 * HIDDEN + N_LAYERS * HIDDEN   # per-row hoisted terms + c0
COMB_W = STATE + OUT_PAD                            # combined output slab width


def _cell_kernel(x_ref, aux_ref, w0_ref, wih_ref, wo_ref, bo_ref, comb_ref):
    """All B*T rows in a single invocation.

    aux row layout: [rec_0 (4H) | rec_1 (4H) | c0_layer0 (H) | c0_layer1 (H)]
    where rec_l = h0_l @ Whh_l.T + bhh_l + bih_l (+ be @ Wih_0.T for layer 0).
    """
    H = HIDDEN
    x = x_ref[...]                      # (N, IN_DIM)
    aux = aux_ref[...]                  # (N, AUX_W)

    parts = []
    h_in = None
    for l in range(N_LAYERS):
        if l == 0:
            # embed Linear fused into layer-0 input->gates weight offline.
            gates = jnp.dot(x, w0_ref[...], preferred_element_type=jnp.float32)
        else:
            gates = jnp.dot(h_in, wih_ref[l - 1],
                            preferred_element_type=jnp.float32)
        gates = gates + aux[:, l * 4 * H:(l + 1) * 4 * H]     # hoisted Whh term + biases
        c_l = aux[:, N_LAYERS * 4 * H + l * H: N_LAYERS * 4 * H + (l + 1) * H]

        # One sigmoid + one tanh over the full 4H-wide gates (2 EUP issues per
        # layer instead of 4), then lane-slice i/f/g/o.
        sg = jax.nn.sigmoid(gates)
        tg = jnp.tanh(gates)
        i_g = sg[:, 0:H]
        f_g = sg[:, H:2 * H]
        g_g = tg[:, 2 * H:3 * H]
        o_g = sg[:, 3 * H:4 * H]

        c_new = f_g * c_l + i_g * g_g
        h_new = o_g * jnp.tanh(c_new)
        parts += [h_new, c_new]
        h_in = h_new

    # output Linear (weights pre-padded to 128 lanes in the wrapper).
    out_pad = jnp.dot(h_in, wo_ref[...],
                      preferred_element_type=jnp.float32) + bo_ref[...]

    # Single lane-dense (N, 256) store: [h0|c0|h1|c1|out_padded].
    comb_ref[...] = jnp.concatenate(parts + [out_pad], axis=1)


def init_params(key):
    """Deterministic parameter init (PyTorch-style uniform + init_bias).

    Note: like the original CustomLSTMCell.init_bias, the forget-gate 1.0 is
    written into BOTH bias_ih and bias_hh (effective +2.0)."""
    ks = jax.random.split(key, 8)
    k_e = 1.0 / jnp.sqrt(IN_DIM)
    k_h = 1.0 / jnp.sqrt(HIDDEN)
    We = jax.random.uniform(ks[0], (HIDDEN, IN_DIM), jnp.float32, -k_e, k_e)
    be = jax.random.uniform(ks[1], (HIDDEN,), jnp.float32, -k_e, k_e)
    Wih = jax.random.uniform(ks[2], (N_LAYERS, 4 * HIDDEN, HIDDEN), jnp.float32, -k_h, k_h)
    Whh = jax.random.uniform(ks[3], (N_LAYERS, 4 * HIDDEN, HIDDEN), jnp.float32, -k_h, k_h)
    bih = jax.random.uniform(ks[4], (N_LAYERS, 4 * HIDDEN), jnp.float32, -k_h, k_h)
    bhh = jax.random.uniform(ks[5], (N_LAYERS, 4 * HIDDEN), jnp.float32, -k_h, k_h)
    bih = bih.at[:, HIDDEN:2 * HIDDEN].set(1.0)
    bhh = bhh.at[:, HIDDEN:2 * HIDDEN].set(1.0)
    Wo = jax.random.uniform(ks[6], (OUT_DIM, HIDDEN), jnp.float32, -k_h, k_h)
    bo = jax.random.uniform(ks[7], (OUT_DIM,), jnp.float32, -k_h, k_h)
    return dict(We=We, be=be, Wih=Wih, Whh=Whh, bih=bih, bhh=bhh, Wo=Wo, bo=bo)


def bare_processing_lstm(params, inputs, hidden_state, length=None):
    """Pallas implementation of BareProcessingLSTM.forward."""
    Bb, Tt, Din = inputs.shape
    if length is None:
        length = Tt
    assert Din == IN_DIM
    H = HIDDEN
    x = inputs[:, :length]
    N = Bb * length

    # Flatten (B, T) -> rows (b-major, matching reshape of x below).
    x2 = x.reshape(N, IN_DIM)

    We, be = params['We'], params['be']
    Wih, Whh = params['Wih'], params['Whh']
    bih, bhh = params['bih'], params['bhh']
    Wo, bo = params['Wo'], params['bo']

    # Hoist the recurrent term: every timestep uses the *initial* hidden state,
    # so h0_l @ Whh_l.T (+ all biases) is constant across T. Precompute per
    # batch row in the wrapper; fold the embed bias path for layer 0 too.
    rec = []
    c0 = []
    for l in range(N_LAYERS):
        h_l = hidden_state[:, l * 2 * H: l * 2 * H + H]
        c_l = hidden_state[:, l * 2 * H + H: (l + 1) * 2 * H]
        r = h_l @ Whh[l].T + bhh[l] + bih[l]
        if l == 0:
            r = r + be @ Wih[0].T
        rec.append(r)                                   # (B, 4H)
        c0.append(c_l)                                  # (B, H)
    aux_b = jnp.concatenate(rec + c0, axis=1)           # (B, AUX_W)
    aux = jnp.repeat(aux_b, length, axis=0)             # (N, AUX_W)  (~30 KB)

    # Fuse embed Linear into layer 0's input->gates weight.
    W0 = We.T @ Wih[0].T                                 # (IN_DIM, 4H)
    wih_rest = jnp.transpose(Wih[1:], (0, 2, 1))         # (L-1, H, 4H)
    WoT_pad = jnp.zeros((H, OUT_PAD), jnp.float32).at[:, :OUT_DIM].set(Wo.T)
    bo_pad = jnp.zeros((1, OUT_PAD), jnp.float32).at[:, :OUT_DIM].set(bo)

    comb = pl.pallas_call(
        _cell_kernel,
        grid=(1,),
        in_specs=[
            pl.BlockSpec((N, IN_DIM), lambda i: (0, 0)),
            pl.BlockSpec((N, AUX_W), lambda i: (0, 0)),
            pl.BlockSpec((IN_DIM, 4 * H), lambda i: (0, 0)),
            pl.BlockSpec((N_LAYERS - 1, H, 4 * H), lambda i: (0, 0, 0)),
            pl.BlockSpec((H, OUT_PAD), lambda i: (0, 0)),
            pl.BlockSpec((1, OUT_PAD), lambda i: (0, 0)),
        ],
        out_specs=pl.BlockSpec((N, COMB_W), lambda i: (0, 0)),
        out_shape=jax.ShapeDtypeStruct((N, COMB_W), jnp.float32),
        compiler_params=pltpu.CompilerParams(dimension_semantics=("arbitrary",)),
    )(x2, aux, W0, wih_rest, WoT_pad, bo_pad)

    hid2 = comb[:, :STATE]
    out2 = comb[:, STATE:STATE + OUT_DIM]
    return {
        'output': out2.reshape(Bb, length, OUT_DIM),
        'hidden_state': hid2.reshape(Bb, length, STATE),
    }


def reference_forward(p, x, h0):
    """Pure-JAX mirror of the literal PyTorch forward (per-timestep from h0)."""
    H = HIDDEN
    Bb, Tt, _ = x.shape
    outs, hids = [], []
    for t in range(Tt):
        xt = x[:, t]
        h_in = xt @ p['We'].T + p['be']
        new_parts = []
        for l in range(N_LAYERS):
            h_l = h0[:, l * 2 * H: l * 2 * H + H]
            c_l = h0[:, l * 2 * H + H: (l + 1) * 2 * H]
            gates = (h_in @ p['Wih'][l].T + p['bih'][l]
                     + h_l @ p['Whh'][l].T + p['bhh'][l])
            i_g = jax.nn.sigmoid(gates[:, :H])
            f_g = jax.nn.sigmoid(gates[:, H:2 * H])
            g_g = jnp.tanh(gates[:, 2 * H:3 * H])
            o_g = jax.nn.sigmoid(gates[:, 3 * H:4 * H])
            c_new = f_g * c_l + i_g * g_g
            h_new = o_g * jnp.tanh(c_new)
            new_parts += [h_new, c_new]
            h_in = h_new
        outs.append(h_in @ p['Wo'].T + p['bo'])
        hids.append(jnp.concatenate(new_parts, axis=1))
    return {'output': jnp.stack(outs, 1), 'hidden_state': jnp.stack(hids, 1)}


if __name__ == "__main__":
    key = jax.random.PRNGKey(0)
    kp, kx, kh = jax.random.split(key, 3)
    params = init_params(kp)
    x = jax.random.normal(kx, (B, T, IN_DIM), jnp.float32)
    hidden_state = jax.random.normal(kh, (B, STATE), jnp.float32)

    out = jax.jit(functools.partial(bare_processing_lstm, params))(x, hidden_state)
    jax.block_until_ready(out)

    ref = reference_forward(params, x, hidden_state)
    assert out['output'].shape == (B, T, OUT_DIM)
    assert out['hidden_state'].shape == (B, T, STATE)
    # Tolerance slightly relaxed vs before because the embed matmul is
    # reassociated into layer-0 (W0 = We.T @ Wih0.T) offline.
    assert jnp.allclose(out['output'], ref['output'], rtol=1e-4, atol=1e-4)
    assert jnp.allclose(out['hidden_state'], ref['hidden_state'], rtol=1e-4, atol=1e-4)
    print("KERNEL_OK")
</pallas_src>

<mosaic_0001>
module attributes {stable_mosaic.version = 11 : i64} {
  func.func @_cell_kernel(%arg0: i32, %arg1: memref<24x16xf32, #tpu.memory_space<vmem>>, %arg2: memref<24x320xf32, #tpu.memory_space<vmem>>, %arg3: memref<16x128xf32, #tpu.memory_space<vmem>>, %arg4: memref<1x32x128xf32, #tpu.memory_space<vmem>>, %arg5: memref<32x128xf32, #tpu.memory_space<vmem>>, %arg6: memref<1x128xf32, #tpu.memory_space<vmem>>, %arg7: memref<24x256xf32, #tpu.memory_space<vmem>>) attributes {dimension_semantics = [#tpu.dimension_semantics<arbitrary>], iteration_bounds = array<i64: 1>, scalar_prefetch = 0 : i64, scratch_operands = 0 : i64, tpu.core_type = #tpu.core_type<tc>, window_params = [{pipeline_mode = #tpu.pipeline_mode<synchronous>, transform_indices = @transform_0, window_bounds = array<i64: 24, 16>}, {pipeline_mode = #tpu.pipeline_mode<synchronous>, transform_indices = @transform_1, window_bounds = array<i64: 24, 320>}, {pipeline_mode = #tpu.pipeline_mode<synchronous>, transform_indices = @transform_2, window_bounds = array<i64: 16, 128>}, {pipeline_mode = #tpu.pipeline_mode<synchronous>, transform_indices = @transform_3, window_bounds = array<i64: 1, 32, 128>}, {pipeline_mode = #tpu.pipeline_mode<synchronous>, transform_indices = @transform_4, window_bounds = array<i64: 32, 128>}, {pipeline_mode = #tpu.pipeline_mode<synchronous>, transform_indices = @transform_5, window_bounds = array<i64: 1, 128>}, {pipeline_mode = #tpu.pipeline_mode<synchronous>, transform_indices = @transform_6, window_bounds = array<i64: 24, 256>}]} {
    %c0 = arith.constant 0 : index
    %c0_0 = arith.constant 0 : index
    %0 = vector.load %arg1[%c0, %c0_0] : memref<24x16xf32, #tpu.memory_space<vmem>>, vector<24x16xf32>
    %c0_1 = arith.constant 0 : index
    %c0_2 = arith.constant 0 : index
    %1 = vector.load %arg2[%c0_1, %c0_2] : memref<24x320xf32, #tpu.memory_space<vmem>>, vector<24x320xf32>
    %c0_3 = arith.constant 0 : index
    %c0_4 = arith.constant 0 : index
    %2 = vector.load %arg3[%c0_3, %c0_4] : memref<16x128xf32, #tpu.memory_space<vmem>>, vector<16x128xf32>
    %cst = arith.constant dense<0.000000e+00> : vector<24x128xf32>
    %3 = tpu.matmul %0, %2, %cst {dimension_numbers = #tpu.dot_dimension_numbers<[1], [0], [0], [1], [0, 0, 1, 1], [], []>} : vector<24x16xf32>, vector<16x128xf32>, vector<24x128xf32> -> vector<24x128xf32>
    %4 = vector.extract_strided_slice %1 {offsets = [0, 0], sizes = [24, 128], strides = [1, 1]} : vector<24x320xf32> to vector<24x128xf32>
    %5 = arith.addf %3, %4 : vector<24x128xf32>
    %6 = vector.extract_strided_slice %1 {offsets = [0, 256], sizes = [24, 32], strides = [1, 1]} : vector<24x320xf32> to vector<24x32xf32>
    %7 = arith.negf %5 : vector<24x128xf32>
    %8 = math.exp %7 : vector<24x128xf32>
    %cst_5 = arith.constant 1.000000e+00 : f32
    %9 = vector.broadcast %cst_5 : f32 to vector<24x128xf32>
    %10 = arith.addf %9, %8 : vector<24x128xf32>
    %11 = arith.divf %9, %10 : vector<24x128xf32>
    %12 = math.tanh %5 : vector<24x128xf32>
    %13 = vector.extract_strided_slice %11 {offsets = [0, 0], sizes = [24, 32], strides = [1, 1]} : vector<24x128xf32> to vector<24x32xf32>
    %14 = vector.extract_strided_slice %11 {offsets = [0, 32], sizes = [24, 32], strides = [1, 1]} : vector<24x128xf32> to vector<24x32xf32>
    %15 = vector.extract_strided_slice %12 {offsets = [0, 64], sizes = [24, 32], strides = [1, 1]} : vector<24x128xf32> to vector<24x32xf32>
    %16 = vector.extract_strided_slice %11 {offsets = [0, 96], sizes = [24, 32], strides = [1, 1]} : vector<24x128xf32> to vector<24x32xf32>
    %17 = arith.mulf %14, %6 : vector<24x32xf32>
    %18 = arith.mulf %13, %15 : vector<24x32xf32>
    %19 = arith.addf %17, %18 : vector<24x32xf32>
    %20 = math.tanh %19 : vector<24x32xf32>
    %21 = arith.mulf %16, %20 : vector<24x32xf32>
    %c0_6 = arith.constant 0 : index
    %c0_7 = arith.constant 0 : index
    %c0_8 = arith.constant 0 : index
    %22 = vector.load %arg4[%c0_6, %c0_7, %c0_8] : memref<1x32x128xf32, #tpu.memory_space<vmem>>, vector<1x32x128xf32>
    %23 = vector.shape_cast %22 : vector<1x32x128xf32> to vector<32x128xf32>
    %cst_9 = arith.constant dense<0.000000e+00> : vector<24x128xf32>
    %24 = tpu.matmul %21, %23, %cst_9 {dimension_numbers = #tpu.dot_dimension_numbers<[1], [0], [0], [1], [0, 0, 1, 1], [], []>} : vector<24x32xf32>, vector<32x128xf32>, vector<24x128xf32> -> vector<24x128xf32>
    %25 = vector.extract_strided_slice %1 {offsets = [0, 128], sizes = [24, 128], strides = [1, 1]} : vector<24x320xf32> to vector<24x128xf32>
    %26 = arith.addf %24, %25 : vector<24x128xf32>
    %27 = vector.extract_strided_slice %1 {offsets = [0, 288], sizes = [24, 32], strides = [1, 1]} : vector<24x320xf32> to vector<24x32xf32>
    %28 = arith.negf %26 : vector<24x128xf32>
    %29 = math.exp %28 : vector<24x128xf32>
    %cst_10 = arith.constant 1.000000e+00 : f32
    %30 = vector.broadcast %cst_10 : f32 to vector<24x128xf32>
    %31 = arith.addf %30, %29 : vector<24x128xf32>
    %32 = arith.divf %30, %31 : vector<24x128xf32>
    %33 = math.tanh %26 : vector<24x128xf32>
    %34 = vector.extract_strided_slice %32 {offsets = [0, 0], sizes = [24, 32], strides = [1, 1]} : vector<24x128xf32> to vector<24x32xf32>
    %35 = vector.extract_strided_slice %32 {offsets = [0, 32], sizes = [24, 32], strides = [1, 1]} : vector<24x128xf32> to vector<24x32xf32>
    %36 = vector.extract_strided_slice %33 {offsets = [0, 64], sizes = [24, 32], strides = [1, 1]} : vector<24x128xf32> to vector<24x32xf32>
    %37 = vector.extract_strided_slice %32 {offsets = [0, 96], sizes = [24, 32], strides = [1, 1]} : vector<24x128xf32> to vector<24x32xf32>
    %38 = arith.mulf %35, %27 : vector<24x32xf32>
    %39 = arith.mulf %34, %36 : vector<24x32xf32>
    %40 = arith.addf %38, %39 : vector<24x32xf32>
    %41 = math.tanh %40 : vector<24x32xf32>
    %42 = arith.mulf %37, %41 : vector<24x32xf32>
    %c0_11 = arith.constant 0 : index
    %c0_12 = arith.constant 0 : index
    %43 = vector.load %arg5[%c0_11, %c0_12] : memref<32x128xf32, #tpu.memory_space<vmem>>, vector<32x128xf32>
    %cst_13 = arith.constant dense<0.000000e+00> : vector<24x128xf32>
    %44 = tpu.matmul %42, %43, %cst_13 {dimension_numbers = #tpu.dot_dimension_numbers<[1], [0], [0], [1], [0, 0, 1, 1], [], []>} : vector<24x32xf32>, vector<32x128xf32>, vector<24x128xf32> -> vector<24x128xf32>
    %c0_14 = arith.constant 0 : index
    %c0_15 = arith.constant 0 : index
    %45 = vector.load %arg6[%c0_14, %c0_15] : memref<1x128xf32, #tpu.memory_space<vmem>>, vector<1x128xf32>
    %46 = vector.broadcast %45 : vector<1x128xf32> to vector<24x128xf32>
    %47 = arith.addf %44, %46 : vector<24x128xf32>
    %48 = tpu.concatenate %21, %19, %42, %40, %47 in 1 : vector<24x32xf32>, vector<24x32xf32>, vector<24x32xf32>, vector<24x32xf32>, vector<24x128xf32> -> vector<24x256xf32>
    %c0_16 = arith.constant 0 : index
    %c0_17 = arith.constant 0 : index
    %49 = vector.load %arg7[%c0_16, %c0_17] : memref<24x256xf32, #tpu.memory_space<vmem>>, vector<24x256xf32>
    tpu.vector_store %arg7[%c0_16, %c0_17], %48 {strides = array<i32>} : memref<24x256xf32, #tpu.memory_space<vmem>>, vector<24x256xf32>,
    return
  }
  func.func @transform_0(%arg0: i32) -> (i32, i32) {
    %c0_i32 = arith.constant 0 : i32
    %c0_i32_0 = arith.constant 0 : i32
    %c0_i32_1 = arith.constant 0 : i32
    return %c0_i32, %c0_i32_0 : i32, i32
  }
  func.func @transform_1(%arg0: i32) -> (i32, i32) {
    %c0_i32 = arith.constant 0 : i32
    %c0_i32_0 = arith.constant 0 : i32
    %c0_i32_1 = arith.constant 0 : i32
    return %c0_i32, %c0_i32_0 : i32, i32
  }
  func.func @transform_2(%arg0: i32) -> (i32, i32) {
    %c0_i32 = arith.constant 0 : i32
    %c0_i32_0 = arith.constant 0 : i32
    %c0_i32_1 = arith.constant 0 : i32
    return %c0_i32, %c0_i32_0 : i32, i32
  }
  func.func @transform_3(%arg0: i32) -> (i32, i32, i32) {
    %c0_i32 = arith.constant 0 : i32
    %c0_i32_0 = arith.constant 0 : i32
    %c0_i32_1 = arith.constant 0 : i32
    %c0_i32_2 = arith.constant 0 : i32
    return %c0_i32, %c0_i32_0, %c0_i32_1 : i32, i32, i32
  }
  func.func @transform_4(%arg0: i32) -> (i32, i32) {
    %c0_i32 = arith.constant 0 : i32
    %c0_i32_0 = arith.constant 0 : i32
    %c0_i32_1 = arith.constant 0 : i32
    return %c0_i32, %c0_i32_0 : i32, i32
  }
  func.func @transform_5(%arg0: i32) -> (i32, i32) {
    %c0_i32 = arith.constant 0 : i32
    %c0_i32_0 = arith.constant 0 : i32
    %c0_i32_1 = arith.constant 0 : i32
    return %c0_i32, %c0_i32_0 : i32, i32
  }
  func.func @transform_6(%arg0: i32) -> (i32, i32) {
    %c0_i32 = arith.constant 0 : i32
    %c0_i32_0 = arith.constant 0 : i32
    %c0_i32_1 = arith.constant 0 : i32
    return %c0_i32, %c0_i32_0 : i32, i32
  }
}

</mosaic_0001>

<llo_original>
// kernel: bare_processing_lstm.1
$region0: #{bare_processing_lstm.1}
  #allocation0 [shape = 'u32[]', space=smem, size = 0x4, offset = 0x4, fixed_abs, tag = 'smem constant byte address 0x4 - core index']
  #allocation1 [shape = 'u32[144,128]{1,0:T(1,128)}', space=vmem, size = 0x12000, scoped, tag = 'internal scratch']
  %s0 = inlined_call_operand.vmem [shape: f32[24,16], index: 0, kind: input, shape index: {}]
  %s1 = inlined_call_operand.vmem [shape: f32[24,320], index: 1, kind: input, shape index: {}]
  %s2 = inlined_call_operand.vmem [shape: f32[16,128], index: 2, kind: input, shape index: {}]
  %s3 = inlined_call_operand.vmem [shape: f32[1,32,128], index: 3, kind: input, shape index: {}]
  %s4 = inlined_call_operand.vmem [shape: f32[32,128], index: 4, kind: input, shape index: {}]
  %s5 = inlined_call_operand.vmem [shape: f32[1,128], index: 5, kind: input, shape index: {}]
  %s6 = inlined_call_operand.vmem [shape: f32[24,256], index: 6, kind: output, shape index: {}]
  %s7 = sld [smem:[#allocation0]]
  $region34: #{bare_processing_lstm.1} parent=0
    _
  %s9 = ssub.s32 1, %s7
  %s10 = scalar_select 0, %s9, %s7
  // Predicated region
  $region2: #{bare_processing_lstm.1} parent=0 // pred_check
    _
  $region3: #{bare_processing_lstm.1} parent=0 // pred_check_branch
    %12 = sbr.rel (0) target = $region5
  $region4: #{bare_processing_lstm.1} parent=0 // pred_region
    _
  $region5: #{bare_processing_lstm.1} parent=0 // pred_fallthru
    _
  // Predicated region
  $region6: #{bare_processing_lstm.1} parent=0 // pred_check
    _
  $region7: #{bare_processing_lstm.1} parent=0 // pred_check_branch
    %14 = sbr.rel (0) target = $region9
  $region8: #{bare_processing_lstm.1} parent=0 // pred_region
    _
  $region9: #{bare_processing_lstm.1} parent=0 // pred_fallthru
    _
  // Predicated region
  $region10: #{bare_processing_lstm.1} parent=0 // pred_check
    _
  $region11: #{bare_processing_lstm.1} parent=0 // pred_check_branch
    %16 = sbr.rel (0) target = $region13
  $region12: #{bare_processing_lstm.1} parent=0 // pred_region
    _
  $region13: #{bare_processing_lstm.1} parent=0 // pred_fallthru
    _
  // Predicated region
  $region14: #{bare_processing_lstm.1} parent=0 // pred_check
    _
  $region15: #{bare_processing_lstm.1} parent=0 // pred_check_branch
    %18 = sbr.rel (0) target = $region17
  $region16: #{bare_processing_lstm.1} parent=0 // pred_region
    _
  $region17: #{bare_processing_lstm.1} parent=0 // pred_fallthru
    _
  // Predicated region
  $region18: #{bare_processing_lstm.1} parent=0 // pred_check
    _
  $region19: #{bare_processing_lstm.1} parent=0 // pred_check_branch
    %20 = sbr.rel (0) target = $region21
  $region20: #{bare_processing_lstm.1} parent=0 // pred_region
    _
  $region21: #{bare_processing_lstm.1} parent=0 // pred_fallthru
    _
  // Predicated region
  $region22: #{bare_processing_lstm.1} parent=0 // pred_check
    _
  $region23: #{bare_processing_lstm.1} parent=0 // pred_check_branch
    %22 = sbr.rel (0) target = $region25
  $region24: #{bare_processing_lstm.1} parent=0 // pred_region
    _
  $region25: #{bare_processing_lstm.1} parent=0 // pred_fallthru
    _
  %v23 = vld [vmem:[%s0] sm:$0xff]
  %v24 = vld [vmem:[%s0 + $0x8] sm:$0xff]
  %v25 = vld [vmem:[%s0 + $0x10] sm:$0xff]
  %v26 = vld [vmem:[%s1] sm:$0xff]
  %v27 = vld [vmem:[%s1 + $0x8] sm:$0xff]
  %v28 = vld [vmem:[%s1 + $0x10] sm:$0xff]
  %v29 = vld [vmem:[%s1 + $0x18] sm:$0xff]
  %v30 = vld [vmem:[%s1 + $0x20] sm:$0xff]
  %v31 = vld [vmem:[%s1 + $0x28] sm:$0xff]
  %v32 = vld [vmem:[%s1 + $0x30] sm:$0xff]
  %v33 = vld [vmem:[%s1 + $0x38] sm:$0xff]
  %v34 = vld [vmem:[%s1 + $0x40] sm:$0xff]
  %v35 = vld [vmem:[%s2] sm:$0xff]
  %v36 = vld [vmem:[%s2 + $0x8] sm:$0xff]
  %vm37 = vcmask 130048
  %v39 = vsel %vm37, %v23, 0
  %v42 = vsel %vm37, %v24, 0
  %v45 = vsel %vm37, %v25, 0
  %47 = vmatprep.subr.mxu0 0.0
  %48 = vmatpush1.msra.mxu0 0.0
  %49 = vmatprep.subr.mxu0 0.0
  %50 = vmatpush1.msra.mxu0 0.0
  %51 = vmatprep.subr.mxu0 0.0
  %52 = vmatpush1.msra.mxu0 0.0
  %53 = vmatprep.subr.mxu0 0.0
  %54 = vmatpush1.msra.mxu0 0.0
  %55 = vmatprep.subr.mxu0 0.0
  %56 = vmatpush1.msra.mxu0 0.0
  %57 = vmatprep.subr.mxu0 0.0
  %58 = vmatpush1.msra.mxu0 0.0
  %59 = vmatprep.subr.mxu0 0.0
  %60 = vmatpush1.msra.mxu0 0.0
  %61 = vmatprep.subr.mxu0 0.0
  %62 = vmatpush1.msra.mxu0 0.0
  %63 = vmatprep.subr.mxu0 0.0
  %64 = vmatpush1.msra.mxu0 0.0
  %65 = vmatprep.subr.mxu0 0.0
  %66 = vmatpush1.msra.mxu0 0.0
  %67 = vmatprep.subr.mxu0 0.0
  %68 = vmatpush1.msra.mxu0 0.0
  %69 = vmatprep.subr.mxu0 0.0
  %70 = vmatpush1.msra.mxu0 0.0
  %71 = vmatprep.subr.mxu0 0.0
  %72 = vmatpush1.msra.mxu0 0.0
  %73 = vmatprep.subr.mxu0 0.0
  %74 = vmatpush1.msra.mxu0 0.0
  %75 = vmatprep.subr.mxu0 0.0
  %76 = vmatpush1.msra.mxu0 %v36
  %77 = vmatprep.subr.mxu0 0.0
  %78 = vmatpush1.msra.mxu0 %v35
  %79 = vmatprep.subr.mxu0 0.0
  %80 = vmatpush2.msra.mxu0 0.0
  %81 = vmatprep.subr.mxu0 0.0
  %82 = vmatpush2.msra.mxu0 0.0
  %83 = vmatprep.subr.mxu0 0.0
  %84 = vmatpush2.msra.mxu0 0.0
  %85 = vmatprep.subr.mxu0 0.0
  %86 = vmatpush2.msra.mxu0 0.0
  %87 = vmatprep.subr.mxu0 0.0
  %88 = vmatpush2.msra.mxu0 0.0
  %89 = vmatprep.subr.mxu0 0.0
  %90 = vmatpush2.msra.mxu0 0.0
  %91 = vmatprep.subr.mxu0 0.0
  %92 = vmatpush2.msra.mxu0 0.0
  %93 = vmatprep.subr.mxu0 0.0
  %94 = vmatpush2.msra.mxu0 0.0
  %95 = vmatprep.subr.mxu0 0.0
  %96 = vmatpush2.msra.mxu0 0.0
  %97 = vmatprep.subr.mxu0 0.0
  %98 = vmatpush2.msra.mxu0 0.0
  %99 = vmatprep.subr.mxu0 0.0
  %100 = vmatpush2.msra.mxu0 0.0
  %101 = vmatprep.subr.mxu0 0.0
  %102 = vmatpush2.msra.mxu0 0.0
  %103 = vmatprep.subr.mxu0 0.0
  %104 = vmatpush2.msra.mxu0 0.0
  %105 = vmatprep.subr.mxu0 0.0
  %106 = vmatpush2.msra.mxu0 0.0
  %107 = vmatprep.subr.mxu0 0.0
  %108 = vmatpush2.msra.mxu0 0.0
  %109 = vmatprep.subr.mxu0 0.0
  %110 = vmatpush2.msra.mxu0 0.0
  %111 = vmatprep.mubr.f32.mxu0 0.0
  %112 = vmatmul.mubr.f32.gmra.mxu0 %v39
  %v113 = vpop.f32.mrf.mxu0
  %v114 = vadd.f32 %v26, %v113
  %v115 = vpop.f32.mrf.mxu0
  %116 = vmatprep.mubr.f32.mxu0 0.0
  %117 = vmatmul.mubr.f32.gmra.mxu0 %v42
  %v118 = vpop.f32.mrf.mxu0
  %v119 = vadd.f32 %v29, %v118
  %v120 = vpop.f32.mrf.mxu0
  %121 = vmatprep.mubr.f32.mxu0 0.0
  %122 = vmatmul.mubr.f32.gmra.mxu0 %v45
  %v123 = vpop.f32.mrf.mxu0
  %v124 = vadd.f32 %v32, %v123
  %v125 = vpop.f32.mrf.mxu0
  %126 = vdwg.mxu0
  %v127 = vxor.u32 %v114, 2147483648
  %v128 = vxor.u32 %v119, 2147483648
  %v129 = vxor.u32 %v124, 2147483648
  %v130 = vmul.f32 %v127, 1.442695
  %v131 = vpow.pop %v130
  %v132 = vmul.f32 %v128, 1.442695
  %v133 = vpow.pop %v132
  %v134 = vmul.f32 %v129, 1.442695
  %v135 = vpow.pop %v134
  %v136 = vadd.f32 %v131, 1.0
  %v137 = vadd.f32 %v133, 1.0
  %v138 = vadd.f32 %v135, 1.0
  %v139 = vrcp.pop %v136
  %v140 = vmul.f32 1.0, %v139
  %v141 = vrcp.pop %v137
  %v142 = vmul.f32 1.0, %v141
  %v143 = vrcp.pop %v138
  %v144 = vmul.f32 1.0, %v143
  %v145 = vtanh.pop %v114
  %v146 = vtanh.pop %v119
  %v147 = vtanh.pop %v124
  %151 = vrot.lane.b32.xlu0 %v28, 32
  %v152 = vpop.permute.xlu0 %151
  %153 = vrot.lane.b32.xlu0 %v31, 32
  %v154 = vpop.permute.xlu0 %153
  %155 = vrot.lane.b32.xlu0 %v34, 32
  %v156 = vpop.permute.xlu0 %155
  %v160 = vmul.f32 %v140, %v152
  %v161 = vmul.f32 %v142, %v154
  %v162 = vmul.f32 %v144, %v156
  %166 = vrot.lane.b32.xlu0 %v145, 64
  %v167 = vpop.permute.xlu0 %166
  %168 = vrot.lane.b32.xlu0 %v146, 64
  %v169 = vpop.permute.xlu0 %168
  %170 = vrot.lane.b32.xlu0 %v147, 64
  %v171 = vpop.permute.xlu0 %170
  %v175 = vmul.f32 %v140, %v167
  %v176 = vmul.f32 %v142, %v169
  %v177 = vmul.f32 %v144, %v171
  %181 = vrot.lane.b32.xlu0 %v175, 32
  %v182 = vpop.permute.xlu0 %181
  %183 = vrot.lane.b32.xlu0 %v176, 32
  %v184 = vpop.permute.xlu0 %183
  %185 = vrot.lane.b32.xlu0 %v177, 32
  %v186 = vpop.permute.xlu0 %185
  %v190 = vadd.f32 %v160, %v182
  %v191 = vadd.f32 %v161, %v184
  %v192 = vadd.f32 %v162, %v186
  %v193 = vtanh.pop %v190
  %v194 = vtanh.pop %v191
  %v195 = vtanh.pop %v192
  %199 = vrot.lane.b32.xlu0 %v193, 64
  %v200 = vpop.permute.xlu0 %199
  %201 = vrot.lane.b32.xlu0 %v194, 64
  %v202 = vpop.permute.xlu0 %201
  %203 = vrot.lane.b32.xlu0 %v195, 64
  %v204 = vpop.permute.xlu0 %203
  %v208 = vmul.f32 %v140, %v200
  %v209 = vmul.f32 %v142, %v202
  %v210 = vmul.f32 %v144, %v204
  %v211 = vld [vmem:[%s3] sm:$0xff]
  %v212 = vld [vmem:[%s3 + $0x8] sm:$0xff]
  %v213 = vld [vmem:[%s3 + $0x10] sm:$0xff]
  %v214 = vld [vmem:[%s3 + $0x18] sm:$0xff]
  %218 = vrot.lane.b32.xlu0 %v208, 32
  %v219 = vpop.permute.xlu0 %218
  %220 = vrot.lane.b32.xlu0 %v209, 32
  %v221 = vpop.permute.xlu0 %220
  %222 = vrot.lane.b32.xlu0 %v210, 32
  %v223 = vpop.permute.xlu0 %222
  %vm224 = vcmask 261120
  %v225 = vsel %vm224, %v219, 0
  %v227 = vsel %vm224, %v221, 0
  %v229 = vsel %vm224, %v223, 0
  %231 = vmatprep.subr.mxu0 0.0
  %232 = vmatpush1.msra.mxu0 0.0
  %233 = vmatprep.subr.mxu0 0.0
  %234 = vmatpush1.msra.mxu0 0.0
  %235 = vmatprep.subr.mxu0 0.0
  %236 = vmatpush1.msra.mxu0 0.0
  %237 = vmatprep.subr.mxu0 0.0
  %238 = vmatpush1.msra.mxu0 0.0
  %239 = vmatprep.subr.mxu0 0.0
  %240 = vmatpush1.msra.mxu0 0.0
  %241 = vmatprep.subr.mxu0 0.0
  %242 = vmatpush1.msra.mxu0 0.0
  %243 = vmatprep.subr.mxu0 0.0
  %244 = vmatpush1.msra.mxu0 0.0
  %245 = vmatprep.subr.mxu0 0.0
  %246 = vmatpush1.msra.mxu0 0.0
  %247 = vmatprep.subr.mxu0 0.0
  %248 = vmatpush1.msra.mxu0 0.0
  %249 = vmatprep.subr.mxu0 0.0
  %250 = vmatpush1.msra.mxu0 0.0
  %251 = vmatprep.subr.mxu0 0.0
  %252 = vmatpush1.msra.mxu0 0.0
  %253 = vmatprep.subr.mxu0 0.0
  %254 = vmatpush1.msra.mxu0 0.0
  %255 = vmatprep.subr.mxu0 0.0
  %256 = vmatpush1.msra.mxu0 %v214
  %257 = vmatprep.subr.mxu0 0.0
  %258 = vmatpush1.msra.mxu0 %v213
  %259 = vmatprep.subr.mxu0 0.0
  %260 = vmatpush1.msra.mxu0 %v212
  %261 = vmatprep.subr.mxu0 0.0
  %262 = vmatpush1.msra.mxu0 %v211
  %263 = vmatprep.subr.mxu0 0.0
  %264 = vmatpush2.msra.mxu0 0.0
  %265 = vmatprep.subr.mxu0 0.0
  %266 = vmatpush2.msra.mxu0 0.0
  %267 = vmatprep.subr.mxu0 0.0
  %268 = vmatpush2.msra.mxu0 0.0
  %269 = vmatprep.subr.mxu0 0.0
  %270 = vmatpush2.msra.mxu0 0.0
  %271 = vmatprep.subr.mxu0 0.0
  %272 = vmatpush2.msra.mxu0 0.0
  %273 = vmatprep.subr.mxu0 0.0
  %274 = vmatpush2.msra.mxu0 0.0
  %275 = vmatprep.subr.mxu0 0.0
  %276 = vmatpush2.msra.mxu0 0.0
  %277 = vmatprep.subr.mxu0 0.0
  %278 = vmatpush2.msra.mxu0 0.0
  %279 = vmatprep.subr.mxu0 0.0
  %280 = vmatpush2.msra.mxu0 0.0
  %281 = vmatprep.subr.mxu0 0.0
  %282 = vmatpush2.msra.mxu0 0.0
  %283 = vmatprep.subr.mxu0 0.0
  %284 = vmatpush2.msra.mxu0 0.0
  %285 = vmatprep.subr.mxu0 0.0
  %286 = vmatpush2.msra.mxu0 0.0
  %287 = vmatprep.subr.mxu0 0.0
  %288 = vmatpush2.msra.mxu0 0.0
  %289 = vmatprep.subr.mxu0 0.0
  %290 = vmatpush2.msra.mxu0 0.0
  %291 = vmatprep.subr.mxu0 0.0
  %292 = vmatpush2.msra.mxu0 0.0
  %293 = vmatprep.subr.mxu0 0.0
  %294 = vmatpush2.msra.mxu0 0.0
  %295 = vmatprep.mubr.f32.mxu0 0.0
  %296 = vmatmul.mubr.f32.gmra.mxu0 %v225
  %v297 = vpop.f32.mrf.mxu0
  %v298 = vadd.f32 %v27, %v297
  %v299 = vpop.f32.mrf.mxu0
  %300 = vmatprep.mubr.f32.mxu0 0.0
  %301 = vmatmul.mubr.f32.gmra.mxu0 %v227
  %v302 = vpop.f32.mrf.mxu0
  %v303 = vadd.f32 %v30, %v302
  %v304 = vpop.f32.mrf.mxu0
  %305 = vmatprep.mubr.f32.mxu0 0.0
  %306 = vmatmul.mubr.f32.gmra.mxu0 %v229
  %v307 = vpop.f32.mrf.mxu0
  %v308 = vadd.f32 %v33, %v307
  %v309 = vpop.f32.mrf.mxu0
  %310 = vdwg.mxu0
  %v311 = vxor.u32 %v298, 2147483648
  %v312 = vxor.u32 %v303, 2147483648
  %v313 = vxor.u32 %v308, 2147483648
  %v314 = vmul.f32 %v311, 1.442695
  %v315 = vpow.pop %v314
  %v316 = vmul.f32 %v312, 1.442695
  %v317 = vpow.pop %v316
  %v318 = vmul.f32 %v313, 1.442695
  %v319 = vpow.pop %v318
  %v320 = vadd.f32 %v315, 1.0
  %v321 = vadd.f32 %v317, 1.0
  %v322 = vadd.f32 %v319, 1.0
  %v323 = vrcp.pop %v320
  %v324 = vmul.f32 1.0, %v323
  %v325 = vrcp.pop %v321
  %v326 = vmul.f32 1.0, %v325
  %v327 = vrcp.pop %v322
  %v328 = vmul.f32 1.0, %v327
  %v329 = vtanh.pop %v298
  %v330 = vtanh.pop %v303
  %v331 = vtanh.pop %v308
  %v332 = vmul.f32 %v324, %v28
  %v333 = vmul.f32 %v326, %v31
  %v334 = vmul.f32 %v328, %v34
  %338 = vrot.lane.b32.xlu0 %v329, 64
  %v339 = vpop.permute.xlu0 %338
  %340 = vrot.lane.b32.xlu0 %v330, 64
  %v341 = vpop.permute.xlu0 %340
  %342 = vrot.lane.b32.xlu0 %v331, 64
  %v343 = vpop.permute.xlu0 %342
  %v347 = vmul.f32 %v324, %v339
  %v348 = vmul.f32 %v326, %v341
  %v349 = vmul.f32 %v328, %v343
  %353 = vrot.lane.b32.xlu0 %v347, 32
  %v354 = vpop.permute.xlu0 %353
  %355 = vrot.lane.b32.xlu0 %v348, 32
  %v356 = vpop.permute.xlu0 %355
  %357 = vrot.lane.b32.xlu0 %v349, 32
  %v358 = vpop.permute.xlu0 %357
  %v362 = vadd.f32 %v332, %v354
  %v363 = vadd.f32 %v333, %v356
  %v364 = vadd.f32 %v334, %v358
  %v365 = vtanh.pop %v362
  %v366 = vtanh.pop %v363
  %v367 = vtanh.pop %v364
  %371 = vrot.lane.b32.xlu0 %v365, 64
  %v372 = vpop.permute.xlu0 %371
  %373 = vrot.lane.b32.xlu0 %v366, 64
  %v374 = vpop.permute.xlu0 %373
  %375 = vrot.lane.b32.xlu0 %v367, 64
  %v376 = vpop.permute.xlu0 %375
  %v380 = vmul.f32 %v324, %v372
  %v381 = vmul.f32 %v326, %v374
  %v382 = vmul.f32 %v328, %v376
  %v383 = vld [vmem:[%s4] sm:$0xff]
  %v384 = vld [vmem:[%s4 + $0x8] sm:$0xff]
  %v385 = vld [vmem:[%s4 + $0x10] sm:$0xff]
  %v386 = vld [vmem:[%s4 + $0x18] sm:$0xff]
  %v387 = vld [vmem:[%s5] sm:$0x1]
  %v389 = vlaneseq
  %v390 = vshrl.u32 %v389, 7
  %v391 = vsub.s32 0, %v390
  %v392 = vrot.slane %v387, %v391
  %397 = vrot.lane.b32.xlu0 %v380, 32
  %v398 = vpop.permute.xlu0 %397
  %399 = vrot.lane.b32.xlu0 %v381, 32
  %v400 = vpop.permute.xlu0 %399
  %401 = vrot.lane.b32.xlu0 %v382, 32
  %v402 = vpop.permute.xlu0 %401
  %v403 = vsel %vm224, %v398, 0
  %v405 = vsel %vm224, %v400, 0
  %v407 = vsel %vm224, %v402, 0
  %409 = vmatprep.subr.mxu0 0.0
  %410 = vmatpush1.msra.mxu0 0.0
  %411 = vmatprep.subr.mxu0 0.0
  %412 = vmatpush1.msra.mxu0 0.0
  %413 = vmatprep.subr.mxu0 0.0
  %414 = vmatpush1.msra.mxu0 0.0
  %415 = vmatprep.subr.mxu0 0.0
  %416 = vmatpush1.msra.mxu0 0.0
  %417 = vmatprep.subr.mxu0 0.0
  %418 = vmatpush1.msra.mxu0 0.0
  %419 = vmatprep.subr.mxu0 0.0
  %420 = vmatpush1.msra.mxu0 0.0
  %421 = vmatprep.subr.mxu0 0.0
  %422 = vmatpush1.msra.mxu0 0.0
  %423 = vmatprep.subr.mxu0 0.0
  %424 = vmatpush1.msra.mxu0 0.0
  %425 = vmatprep.subr.mxu0 0.0
  %426 = vmatpush1.msra.mxu0 0.0
  %427 = vmatprep.subr.mxu0 0.0
  %428 = vmatpush1.msra.mxu0 0.0
  %429 = vmatprep.subr.mxu0 0.0
  %430 = vmatpush1.msra.mxu0 0.0
  %431 = vmatprep.subr.mxu0 0.0
  %432 = vmatpush1.msra.mxu0 0.0
  %433 = vmatprep.subr.mxu0 0.0
  %434 = vmatpush1.msra.mxu0 %v386
  %435 = vmatprep.subr.mxu0 0.0
  %436 = vmatpush1.msra.mxu0 %v385
  %437 = vmatprep.subr.mxu0 0.0
  %438 = vmatpush1.msra.mxu0 %v384
  %439 = vmatprep.subr.mxu0 0.0
  %440 = vmatpush1.msra.mxu0 %v383
  %441 = vmatprep.subr.mxu0 0.0
  %442 = vmatpush2.msra.mxu0 0.0
  %443 = vmatprep.subr.mxu0 0.0
  %444 = vmatpush2.msra.mxu0 0.0
  %445 = vmatprep.subr.mxu0 0.0
  %446 = vmatpush2.msra.mxu0 0.0
  %447 = vmatprep.subr.mxu0 0.0
  %448 = vmatpush2.msra.mxu0 0.0
  %449 = vmatprep.subr.mxu0 0.0
  %450 = vmatpush2.msra.mxu0 0.0
  %451 = vmatprep.subr.mxu0 0.0
  %452 = vmatpush2.msra.mxu0 0.0
  %453 = vmatprep.subr.mxu0 0.0
  %454 = vmatpush2.msra.mxu0 0.0
  %455 = vmatprep.subr.mxu0 0.0
  %456 = vmatpush2.msra.mxu0 0.0
  %457 = vmatprep.subr.mxu0 0.0
  %458 = vmatpush2.msra.mxu0 0.0
  %459 = vmatprep.subr.mxu0 0.0
  %460 = vmatpush2.msra.mxu0 0.0
  %461 = vmatprep.subr.mxu0 0.0
  %462 = vmatpush2.msra.mxu0 0.0
  %463 = vmatprep.subr.mxu0 0.0
  %464 = vmatpush2.msra.mxu0 0.0
  %465 = vmatprep.subr.mxu0 0.0
  %466 = vmatpush2.msra.mxu0 0.0
  %467 = vmatprep.subr.mxu0 0.0
  %468 = vmatpush2.msra.mxu0 0.0
  %469 = vmatprep.subr.mxu0 0.0
  %470 = vmatpush2.msra.mxu0 0.0
  %471 = vmatprep.subr.mxu0 0.0
  %472 = vmatpush2.msra.mxu0 0.0
  %473 = vmatprep.mubr.f32.mxu0 0.0
  %474 = vmatmul.mubr.f32.gmra.mxu0 %v403
  %v475 = vpop.f32.mrf.mxu0
  %v476 = vadd.f32 %v392, %v475
  %v477 = vpop.f32.mrf.mxu0
  %478 = vmatprep.mubr.f32.mxu0 0.0
  %479 = vmatmul.mubr.f32.gmra.mxu0 %v405
  %v480 = vpop.f32.mrf.mxu0
  %v481 = vadd.f32 %v392, %v480
  %v482 = vpop.f32.mrf.mxu0
  %483 = vmatprep.mubr.f32.mxu0 0.0
  %484 = vmatmul.mubr.f32.gmra.mxu0 %v407
  %v485 = vpop.f32.mrf.mxu0
  %v486 = vadd.f32 %v392, %v485
  %v487 = vpop.f32.mrf.mxu0
  %488 = vdwg.mxu0
  %492 = vrot.lane.b32.xlu0 %v380, 96
  %v493 = vpop.permute.xlu0 %492
  %494 = vrot.lane.b32.xlu0 %v381, 96
  %v495 = vpop.permute.xlu0 %494
  %496 = vrot.lane.b32.xlu0 %v382, 96
  %v497 = vpop.permute.xlu0 %496
  %504 = vrot.lane.b32.xlu0 %v362, 64
  %v505 = vpop.permute.xlu0 %504
  %506 = vrot.lane.b32.xlu0 %v363, 64
  %v507 = vpop.permute.xlu0 %506
  %508 = vrot.lane.b32.xlu0 %v364, 64
  %v509 = vpop.permute.xlu0 %508
  %v513 = vsel %vm224, %v219, %v190
  %v514 = vsel %vm224, %v221, %v191
  %v515 = vsel %vm224, %v223, %v192
  %vm516 = vcmask 523264
  %v517 = vsel %vm516, %v513, %v493
  %v518 = vsel %vm516, %v514, %v495
  %v519 = vsel %vm516, %v515, %v497
  %vm520 = vcmask 785408
  %v521 = vsel %vm520, %v517, %v505
  %v522 = vsel %vm520, %v518, %v507
  %v523 = vsel %vm520, %v519, %v509
  %524 = vst [vmem:[%s6] sm:$0xff] %v521
  %525 = vst [vmem:[%s6 + $0x8] sm:$0xff] %v476
  %526 = vst [vmem:[%s6 + $0x10] sm:$0xff] %v522
  %527 = vst [vmem:[%s6 + $0x18] sm:$0xff] %v481
  %528 = vst [vmem:[%s6 + $0x20] sm:$0xff] %v523
  %529 = vst [vmem:[%s6 + $0x28] sm:$0xff] %v486
  // Predicated region
  $region26: #{bare_processing_lstm.1} parent=0 // pred_check
    _
  $region27: #{bare_processing_lstm.1} parent=0 // pred_check_branch
    %531 = sbr.rel (0) target = $region29
  $region28: #{bare_processing_lstm.1} parent=0 // pred_region
    _
  $region29: #{bare_processing_lstm.1} parent=0 // pred_fallthru
    _
  // Predicated region
  $region30: #{bare_processing_lstm.1} parent=0 // pred_check
    _
  $region31: #{bare_processing_lstm.1} parent=0 // pred_check_branch
    %533 = sbr.rel (0) target = $region33
  $region32: #{bare_processing_lstm.1} parent=0 // pred_region
    _
  $region33: #{bare_processing_lstm.1} parent=0 // pred_fallthru
    _

</llo_original>
